<compile_context>
chip_gen: v7x
topology: tpu7x:2x2x1
jax: 0.10.0
libtpu: 0.0.40
codegen_flags: <defaults>
</compile_context>

<pallas_src>
import jax
import jax.numpy as jnp
from jax import lax
from jax.experimental import pallas as pl
from jax.experimental.pallas import tpu as pltpu

block_size = 8                    # T
n_embd = 32                       # C
n_heads = 4
head_size = n_embd // n_heads     # 8
LANE = 128                        # lane-dense padded projection width
W_ROWS = n_embd + 8               # packed weight rows (proj bias stashed in row n_embd)
W_COLS = LANE + 3 * n_embd        # packed weight cols: [Wp_pad | bias row] ++ [Wqkv]


def mha_kernel(x_ref, w_ref, o_ref):
    T = x_ref.shape[0]
    x = x_ref[...]                                                   # (T, C) f32

    # Unpack the single fused weight buffer (one weight DMA per call).
    wp = w_ref[0:n_embd, 0:LANE]                                     # (C, 128)  proj weight
    bp = w_ref[n_embd:n_embd + 1, 0:LANE]                            # (1, 128)  proj bias
    wqkv = w_ref[0:n_embd, LANE:LANE + 3 * n_embd]                   # (C, 3C)   fused QKV

    # Fused Q/K/V projection: one MXU matmul (C**-0.5 already folded into the Q columns).
    qkv = jnp.dot(x, wqkv, preferred_element_type=jnp.float32)       # (T, 3C)

    # Additive causal bias, computed once before the head loop (adds instead of selects).
    r = lax.broadcasted_iota(jnp.int32, (T, T), 0)
    c = lax.broadcasted_iota(jnp.int32, (T, T), 1)
    causal_bias = jnp.where(c <= r, 0.0, -1e30).astype(jnp.float32)  # (T, T)

    ctx_heads = []
    for h in range(n_heads):       # static, unrolled loop over heads
        q_h = qkv[:, h * head_size:(h + 1) * head_size]                            # (T, hs)
        k_h = qkv[:, n_embd + h * head_size:n_embd + (h + 1) * head_size]
        v_h = qkv[:, 2 * n_embd + h * head_size:2 * n_embd + (h + 1) * head_size]

        # q_h @ k_h^T without an explicit transpose.
        wei = lax.dot_general(q_h, k_h, (((1,), (1,)), ((), ())),
                              preferred_element_type=jnp.float32)                  # (T, T)
        wei = wei + causal_bias
        wei = wei - jnp.max(wei, axis=-1, keepdims=True)              # XLU reduce
        p = jnp.exp(wei)                                              # EUP
        inv = pl.reciprocal(jnp.sum(p, axis=-1, keepdims=True), approx=True)       # EUP
        p = p * inv
        # TODO(synk): attention-weight dropout omitted (eval-mode identity)

        ctx_heads.append(jnp.dot(p, v_h, preferred_element_type=jnp.float32))      # (T, hs)

    # Lane-concat the per-head contexts into one (T, C) tile (single 128-lane vreg tile),
    # then a single fused output-projection matmul + bias add.
    ctx = jnp.concatenate(ctx_heads, axis=-1)                                      # (T, C)
    out = jnp.dot(ctx, wp, preferred_element_type=jnp.float32) + bp                # (T, 128)
    # TODO(synk): output dropout omitted (eval-mode identity)
    o_ref[...] = out.astype(o_ref.dtype)       # lane-dense, unmasked 128-wide store


def multi_head_attention(x, w_packed):
    B, T, C = x.shape
    x2d = x.reshape(B * T, C)
    out = pl.pallas_call(
        mha_kernel,
        out_shape=jax.ShapeDtypeStruct((B * T, LANE), x.dtype),
        grid=(B,),
        in_specs=[
            pl.BlockSpec((T, C), lambda b: (b, 0)),               # one batch row-block/step
            pl.BlockSpec((W_ROWS, W_COLS), lambda b: (0, 0)),     # packed weights, 1 DMA
        ],
        out_specs=pl.BlockSpec((T, LANE), lambda b: (b, 0)),
        # "parallel" over batch -> both v7x TensorCores; on v5e/v6e (1 TC) the extra grid
        # step costs ~0.35us, negligible and it keeps the design scalable in B/T.
        compiler_params=pltpu.CompilerParams(dimension_semantics=("parallel",)),
    )(x2d, w_packed)
    return out[:, :C].reshape(B, T, C)


def init_params(key):
    """Deterministic parameter init mirroring the PyTorch module shapes (raw params)."""
    keys = jax.random.split(key, 3 * n_heads + 2)
    # Per-head nn.Linear(n_embd, head_size, bias=False): weight shape (head_size, n_embd)
    wq_heads = [0.02 * jax.random.normal(keys[3 * h + 0], (head_size, n_embd), jnp.float32)
                for h in range(n_heads)]
    wk_heads = [0.02 * jax.random.normal(keys[3 * h + 1], (head_size, n_embd), jnp.float32)
                for h in range(n_heads)]
    wv_heads = [0.02 * jax.random.normal(keys[3 * h + 2], (head_size, n_embd), jnp.float32)
                for h in range(n_heads)]
    # Fuse heads: x @ W gives head h in columns [h*hs, (h+1)*hs)
    wq = jnp.concatenate([w.T for w in wq_heads], axis=1)   # (C, n_heads*hs)
    wk = jnp.concatenate([w.T for w in wk_heads], axis=1)
    wv = jnp.concatenate([w.T for w in wv_heads], axis=1)
    # proj: nn.Linear(n_embd, n_embd) -> weight (C, C), bias (C,)
    wp = 0.02 * jax.random.normal(keys[-2], (n_embd, n_embd), jnp.float32)
    bp = 0.01 * jax.random.normal(keys[-1], (n_embd,), jnp.float32)
    return wq, wk, wv, wp.T, bp


def pack_params(wq, wk, wv, wp_t, bp):
    """Init-time weight prep: scale folding, QKV fusion, lane padding, single packed buffer."""
    scale = jnp.float32(n_embd) ** jnp.float32(-0.5)      # reference scales by C, not head_size
    w_qkv = jnp.concatenate([wq * scale, wk, wv], axis=1)                    # (C, 3C)
    packed = jnp.zeros((W_ROWS, W_COLS), jnp.float32)
    packed = packed.at[0:n_embd, 0:n_embd].set(wp_t)                         # Wp (lane-padded)
    packed = packed.at[n_embd, 0:n_embd].set(bp)                             # bias row
    packed = packed.at[0:n_embd, LANE:LANE + 3 * n_embd].set(w_qkv)          # fused Wqkv
    return packed


def reference(x, wq, wk, wv, wp_t, bp):
    """Pure-JAX reference matching the PyTorch forward (eval mode)."""
    B, T, C = x.shape
    q = x @ wq
    k = x @ wk
    v = x @ wv
    tril = jnp.tril(jnp.ones((T, T), bool))
    outs = []
    for h in range(n_heads):
        qh = q[..., h * head_size:(h + 1) * head_size]
        kh = k[..., h * head_size:(h + 1) * head_size]
        vh = v[..., h * head_size:(h + 1) * head_size]
        wei = jnp.einsum('btd,bsd->bts', qh, kh) * (C ** -0.5)
        wei = jnp.where(tril, wei, -jnp.inf)
        wei = jax.nn.softmax(wei, axis=-1)
        outs.append(jnp.einsum('bts,bsd->btd', wei, vh))
    cat = jnp.concatenate(outs, axis=-1)
    return cat @ wp_t + bp


if __name__ == "__main__":
    key = jax.random.PRNGKey(0)
    k_x, k_p = jax.random.split(key)

    B, T, C = 2, block_size, n_embd
    x = jax.random.normal(k_x, (B, T, C), jnp.float32)
    raw_params = init_params(k_p)
    w_packed = pack_params(*raw_params)

    out = multi_head_attention(x, w_packed)
    out = jax.block_until_ready(out)

    ref = reference(x, *raw_params)
    assert out.shape == (B, T, C)
    # 1e-4 tolerance: pl.reciprocal(approx=True) in the softmax denominator.
    assert jnp.allclose(out, ref, atol=1e-4, rtol=1e-4), "mismatch vs reference"

    print("KERNEL_OK")
</pallas_src>

<mosaic_0001>
module attributes {stable_mosaic.version = 11 : i64} {
  func.func @mha_kernel(%arg0: i32, %arg1: memref<8x32xf32, #tpu.memory_space<vmem>>, %arg2: memref<40x224xf32, #tpu.memory_space<vmem>>, %arg3: memref<8x128xf32, #tpu.memory_space<vmem>>) attributes {dimension_semantics = [#tpu.dimension_semantics<parallel>], iteration_bounds = array<i64: 2>, scalar_prefetch = 0 : i64, scratch_operands = 0 : i64, tpu.core_type = #tpu.core_type<tc>, window_params = [{transform_indices = @transform_0, window_bounds = array<i64: 8, 32>}, {pipeline_mode = #tpu.pipeline_mode<synchronous>, transform_indices = @transform_1, window_bounds = array<i64: 40, 224>}, {transform_indices = @transform_2, window_bounds = array<i64: 8, 128>}]} {
    %c0 = arith.constant 0 : index
    %c0_0 = arith.constant 0 : index
    %0 = vector.load %arg1[%c0, %c0_0] : memref<8x32xf32, #tpu.memory_space<vmem>>, vector<8x32xf32>
    %c0_1 = arith.constant 0 : index
    %c0_2 = arith.constant 0 : index
    %1 = vector.load %arg2[%c0_1, %c0_2] : memref<40x224xf32, #tpu.memory_space<vmem>>, vector<32x128xf32>
    %c32 = arith.constant 32 : index
    %c0_3 = arith.constant 0 : index
    %2 = vector.load %arg2[%c32, %c0_3] : memref<40x224xf32, #tpu.memory_space<vmem>>, vector<1x128xf32>
    %c0_4 = arith.constant 0 : index
    %c128 = arith.constant 128 : index
    %3 = vector.load %arg2[%c0_4, %c128] : memref<40x224xf32, #tpu.memory_space<vmem>>, vector<32x96xf32>
    %cst = arith.constant dense<0.000000e+00> : vector<8x96xf32>
    %4 = tpu.matmul %0, %3, %cst {dimension_numbers = #tpu.dot_dimension_numbers<[1], [0], [0], [1], [0, 0, 1, 1], [], []>} : vector<8x32xf32>, vector<32x96xf32>, vector<8x96xf32> -> vector<8x96xf32>
    %5 = tpu.iota {dimensions = array<i32: 0>} : vector<8x8xi32>
    %6 = tpu.iota {dimensions = array<i32: 1>} : vector<8x8xi32>
    %7 = arith.cmpi sle, %6, %5 : vector<8x8xi32>
    %cst_5 = arith.constant 0.000000e+00 : f32
    %cst_6 = arith.constant -1.000000e+30 : f32
    %8 = vector.broadcast %cst_5 : f32 to vector<8x8xf32>
    %9 = vector.broadcast %cst_6 : f32 to vector<8x8xf32>
    %10 = arith.select %7, %8, %9 : vector<8x8xi1>, vector<8x8xf32>
    %11 = vector.extract_strided_slice %4 {offsets = [0, 0], sizes = [8, 8], strides = [1, 1]} : vector<8x96xf32> to vector<8x8xf32>
    %12 = vector.extract_strided_slice %4 {offsets = [0, 32], sizes = [8, 8], strides = [1, 1]} : vector<8x96xf32> to vector<8x8xf32>
    %13 = vector.extract_strided_slice %4 {offsets = [0, 64], sizes = [8, 8], strides = [1, 1]} : vector<8x96xf32> to vector<8x8xf32>
    %cst_7 = arith.constant dense<0.000000e+00> : vector<8x8xf32>
    %14 = tpu.matmul %11, %12, %cst_7 {dimension_numbers = #tpu.dot_dimension_numbers<[1], [1], [0], [0], [0, 0, 1, 0], [], []>} : vector<8x8xf32>, vector<8x8xf32>, vector<8x8xf32> -> vector<8x8xf32>
    %15 = arith.addf %14, %10 : vector<8x8xf32>
    %cst_8 = arith.constant dense<0xFF800000> : vector<8xf32>
    %16 = vector.multi_reduction <maximumf>, %15, %cst_8 [1] : vector<8x8xf32> to vector<8xf32>
    %17 = vector.shape_cast %16 : vector<8xf32> to vector<8x1xf32>
    %18 = vector.broadcast %17 : vector<8x1xf32> to vector<8x8xf32>
    %19 = arith.subf %15, %18 : vector<8x8xf32>
    %20 = math.exp %19 : vector<8x8xf32>
    %cst_9 = arith.constant dense<0.000000e+00> : vector<8xf32>
    %21 = vector.multi_reduction <add>, %20, %cst_9 [1] : vector<8x8xf32> to vector<8xf32>
    %22 = vector.shape_cast %21 : vector<8xf32> to vector<8x1xf32>
    %23 = tpu.reciprocal %22 {approx = true} : vector<8x1xf32> -> vector<8x1xf32>
    %24 = vector.broadcast %23 : vector<8x1xf32> to vector<8x8xf32>
    %25 = arith.mulf %20, %24 : vector<8x8xf32>
    %cst_10 = arith.constant dense<0.000000e+00> : vector<8x8xf32>
    %26 = tpu.matmul %25, %13, %cst_10 {dimension_numbers = #tpu.dot_dimension_numbers<[1], [0], [0], [1], [0, 0, 1, 1], [], []>} : vector<8x8xf32>, vector<8x8xf32>, vector<8x8xf32> -> vector<8x8xf32>
    %27 = vector.extract_strided_slice %4 {offsets = [0, 8], sizes = [8, 8], strides = [1, 1]} : vector<8x96xf32> to vector<8x8xf32>
    %28 = vector.extract_strided_slice %4 {offsets = [0, 40], sizes = [8, 8], strides = [1, 1]} : vector<8x96xf32> to vector<8x8xf32>
    %29 = vector.extract_strided_slice %4 {offsets = [0, 72], sizes = [8, 8], strides = [1, 1]} : vector<8x96xf32> to vector<8x8xf32>
    %cst_11 = arith.constant dense<0.000000e+00> : vector<8x8xf32>
    %30 = tpu.matmul %27, %28, %cst_11 {dimension_numbers = #tpu.dot_dimension_numbers<[1], [1], [0], [0], [0, 0, 1, 0], [], []>} : vector<8x8xf32>, vector<8x8xf32>, vector<8x8xf32> -> vector<8x8xf32>
    %31 = arith.addf %30, %10 : vector<8x8xf32>
    %cst_12 = arith.constant dense<0xFF800000> : vector<8xf32>
    %32 = vector.multi_reduction <maximumf>, %31, %cst_12 [1] : vector<8x8xf32> to vector<8xf32>
    %33 = vector.shape_cast %32 : vector<8xf32> to vector<8x1xf32>
    %34 = vector.broadcast %33 : vector<8x1xf32> to vector<8x8xf32>
    %35 = arith.subf %31, %34 : vector<8x8xf32>
    %36 = math.exp %35 : vector<8x8xf32>
    %cst_13 = arith.constant dense<0.000000e+00> : vector<8xf32>
    %37 = vector.multi_reduction <add>, %36, %cst_13 [1] : vector<8x8xf32> to vector<8xf32>
    %38 = vector.shape_cast %37 : vector<8xf32> to vector<8x1xf32>
    %39 = tpu.reciprocal %38 {approx = true} : vector<8x1xf32> -> vector<8x1xf32>
    %40 = vector.broadcast %39 : vector<8x1xf32> to vector<8x8xf32>
    %41 = arith.mulf %36, %40 : vector<8x8xf32>
    %cst_14 = arith.constant dense<0.000000e+00> : vector<8x8xf32>
    %42 = tpu.matmul %41, %29, %cst_14 {dimension_numbers = #tpu.dot_dimension_numbers<[1], [0], [0], [1], [0, 0, 1, 1], [], []>} : vector<8x8xf32>, vector<8x8xf32>, vector<8x8xf32> -> vector<8x8xf32>
    %43 = vector.extract_strided_slice %4 {offsets = [0, 16], sizes = [8, 8], strides = [1, 1]} : vector<8x96xf32> to vector<8x8xf32>
    %44 = vector.extract_strided_slice %4 {offsets = [0, 48], sizes = [8, 8], strides = [1, 1]} : vector<8x96xf32> to vector<8x8xf32>
    %45 = vector.extract_strided_slice %4 {offsets = [0, 80], sizes = [8, 8], strides = [1, 1]} : vector<8x96xf32> to vector<8x8xf32>
    %cst_15 = arith.constant dense<0.000000e+00> : vector<8x8xf32>
    %46 = tpu.matmul %43, %44, %cst_15 {dimension_numbers = #tpu.dot_dimension_numbers<[1], [1], [0], [0], [0, 0, 1, 0], [], []>} : vector<8x8xf32>, vector<8x8xf32>, vector<8x8xf32> -> vector<8x8xf32>
    %47 = arith.addf %46, %10 : vector<8x8xf32>
    %cst_16 = arith.constant dense<0xFF800000> : vector<8xf32>
    %48 = vector.multi_reduction <maximumf>, %47, %cst_16 [1] : vector<8x8xf32> to vector<8xf32>
    %49 = vector.shape_cast %48 : vector<8xf32> to vector<8x1xf32>
    %50 = vector.broadcast %49 : vector<8x1xf32> to vector<8x8xf32>
    %51 = arith.subf %47, %50 : vector<8x8xf32>
    %52 = math.exp %51 : vector<8x8xf32>
    %cst_17 = arith.constant dense<0.000000e+00> : vector<8xf32>
    %53 = vector.multi_reduction <add>, %52, %cst_17 [1] : vector<8x8xf32> to vector<8xf32>
    %54 = vector.shape_cast %53 : vector<8xf32> to vector<8x1xf32>
    %55 = tpu.reciprocal %54 {approx = true} : vector<8x1xf32> -> vector<8x1xf32>
    %56 = vector.broadcast %55 : vector<8x1xf32> to vector<8x8xf32>
    %57 = arith.mulf %52, %56 : vector<8x8xf32>
    %cst_18 = arith.constant dense<0.000000e+00> : vector<8x8xf32>
    %58 = tpu.matmul %57, %45, %cst_18 {dimension_numbers = #tpu.dot_dimension_numbers<[1], [0], [0], [1], [0, 0, 1, 1], [], []>} : vector<8x8xf32>, vector<8x8xf32>, vector<8x8xf32> -> vector<8x8xf32>
    %59 = vector.extract_strided_slice %4 {offsets = [0, 24], sizes = [8, 8], strides = [1, 1]} : vector<8x96xf32> to vector<8x8xf32>
    %60 = vector.extract_strided_slice %4 {offsets = [0, 56], sizes = [8, 8], strides = [1, 1]} : vector<8x96xf32> to vector<8x8xf32>
    %61 = vector.extract_strided_slice %4 {offsets = [0, 88], sizes = [8, 8], strides = [1, 1]} : vector<8x96xf32> to vector<8x8xf32>
    %cst_19 = arith.constant dense<0.000000e+00> : vector<8x8xf32>
    %62 = tpu.matmul %59, %60, %cst_19 {dimension_numbers = #tpu.dot_dimension_numbers<[1], [1], [0], [0], [0, 0, 1, 0], [], []>} : vector<8x8xf32>, vector<8x8xf32>, vector<8x8xf32> -> vector<8x8xf32>
    %63 = arith.addf %62, %10 : vector<8x8xf32>
    %cst_20 = arith.constant dense<0xFF800000> : vector<8xf32>
    %64 = vector.multi_reduction <maximumf>, %63, %cst_20 [1] : vector<8x8xf32> to vector<8xf32>
    %65 = vector.shape_cast %64 : vector<8xf32> to vector<8x1xf32>
    %66 = vector.broadcast %65 : vector<8x1xf32> to vector<8x8xf32>
    %67 = arith.subf %63, %66 : vector<8x8xf32>
    %68 = math.exp %67 : vector<8x8xf32>
    %cst_21 = arith.constant dense<0.000000e+00> : vector<8xf32>
    %69 = vector.multi_reduction <add>, %68, %cst_21 [1] : vector<8x8xf32> to vector<8xf32>
    %70 = vector.shape_cast %69 : vector<8xf32> to vector<8x1xf32>
    %71 = tpu.reciprocal %70 {approx = true} : vector<8x1xf32> -> vector<8x1xf32>
    %72 = vector.broadcast %71 : vector<8x1xf32> to vector<8x8xf32>
    %73 = arith.mulf %68, %72 : vector<8x8xf32>
    %cst_22 = arith.constant dense<0.000000e+00> : vector<8x8xf32>
    %74 = tpu.matmul %73, %61, %cst_22 {dimension_numbers = #tpu.dot_dimension_numbers<[1], [0], [0], [1], [0, 0, 1, 1], [], []>} : vector<8x8xf32>, vector<8x8xf32>, vector<8x8xf32> -> vector<8x8xf32>
    %75 = tpu.concatenate %26, %42, %58, %74 in 1 : vector<8x8xf32>, vector<8x8xf32>, vector<8x8xf32>, vector<8x8xf32> -> vector<8x32xf32>
    %cst_23 = arith.constant dense<0.000000e+00> : vector<8x128xf32>
    %76 = tpu.matmul %75, %1, %cst_23 {dimension_numbers = #tpu.dot_dimension_numbers<[1], [0], [0], [1], [0, 0, 1, 1], [], []>} : vector<8x32xf32>, vector<32x128xf32>, vector<8x128xf32> -> vector<8x128xf32>
    %77 = vector.broadcast %2 : vector<1x128xf32> to vector<8x128xf32>
    %78 = arith.addf %76, %77 : vector<8x128xf32>
    %c0_24 = arith.constant 0 : index
    %c0_25 = arith.constant 0 : index
    %79 = vector.load %arg3[%c0_24, %c0_25] : memref<8x128xf32, #tpu.memory_space<vmem>>, vector<8x128xf32>
    tpu.vector_store %arg3[%c0_24, %c0_25], %78 {strides = array<i32>} : memref<8x128xf32, #tpu.memory_space<vmem>>, vector<8x128xf32>,
    return
  }
  func.func @transform_0(%arg0: i32) -> (i32, i32) {
    %c0_i32 = arith.constant 0 : i32
    %c0_i32_0 = arith.constant 0 : i32
    return %arg0, %c0_i32 : i32, i32
  }
  func.func @transform_1(%arg0: i32) -> (i32, i32) {
    %c0_i32 = arith.constant 0 : i32
    %c0_i32_0 = arith.constant 0 : i32
    %c0_i32_1 = arith.constant 0 : i32
    return %c0_i32, %c0_i32_0 : i32, i32
  }
  func.func @transform_2(%arg0: i32) -> (i32, i32) {
    %c0_i32 = arith.constant 0 : i32
    %c0_i32_0 = arith.constant 0 : i32
    return %arg0, %c0_i32 : i32, i32
  }
}

</mosaic_0001>

<llo_original>
// kernel: tpu_custom_call.1
$region0: #{tpu_custom_call.1}
  #allocation0 [shape = 'u32[]', space=smem, size = 0x4, offset = 0x4, fixed_abs, tag = 'smem constant byte address 0x4 - core index']
  #allocation1 [shape = 'u32[144,128]{1,0:T(1,128)}', space=vmem, size = 0x12000, scoped, tag = 'internal scratch']
  %s0 = inlined_call_operand.hbm [shape: f32[16,32], index: 0, kind: input, shape index: {}]
  %s1 = inlined_call_operand.hbm [shape: f32[40,224], index: 1, kind: input, shape index: {}]
  %s2 = inlined_call_operand.hbm [shape: f32[16,128], index: 2, kind: output, shape index: {}]
  %s3 = sld [smem:[#allocation0]]
  $region49: #{tpu_custom_call.1} parent=0
    _
  %s5 = ssub.s32 1, %s3
  %s6 = scalar_select 0, %s5, %s3
  $region1: #{tpu_custom_call.1} parent=0
    #allocation2 [shape = 'u8[8192]{0}', space=vmem, size = 0x2000, scoped, tag = 'input window, operand 0']
    #allocation3 [shape = 's32[2]{0}', space=sflag, size = 0x8, scoped, tag = 'scoped memory for tpu_custom_call.1']
    #allocation4 [shape = 's32[2]{0}', space=sflag, size = 0x8, scoped, tag = 'scoped memory for tpu_custom_call.1']
    #allocation5 [shape = 'u8[40960]{0}', space=vmem, size = 0xa000, scoped, tag = 'input window, operand 1, single buffered']
    #allocation6 [shape = 's32[1]{0}', space=sflag, size = 0x4, scoped, tag = 'scoped memory for tpu_custom_call.1']
    #allocation7 [shape = 'u8[8192]{0}', space=vmem, size = 0x2000, scoped, tag = 'output window, operand 0']
    %7 = vsyncpa [#allocation3], 0
    %s8 = scalar_lea.sflag [#allocation3], 1
    %9 = vsyncpa %s8, 0
    %10 = vsyncpa [#allocation6], 0
    %11 = vsyncpa [#allocation4], 0
    %s12 = scalar_lea.sflag [#allocation4], 1
    %13 = vsyncpa %s12, 0
    loop: start=0, step=1, limit=4
    $region2: #{tpu_custom_call.1} parent=1 // loop_pre_header
      _
    $region3: #{tpu_custom_call.1} parent=1 // loop_header
      %s15 = sphi 0, %s19
      %p16 = scmp.ge.s32.totalorder %s15, 4
      %s25 = sphi 0, %s27
      %s28 = sphi 0, %s25
      %s29 = sphi 0, %s28
      %s45 = sphi 0, %s29
      %s49 = sphi 0, %s49
      %s51 = sphi 0, %s49
      %s52 = sphi 0, %s51
      %s66 = sphi 0, %s52
      %s72 = sphi 0, %s74
      %s75 = sphi 0, %s72
      %s76 = sphi 0, %s75
      %s92 = sphi 0, %s76
    $region4: #{tpu_custom_call.1} parent=1 // loop_header_branch
      %18 = sbr.rel (%p16) target = $region8
    $region5: #{tpu_custom_call.1} parent=1 // loop_body
      %s20 = ssub.s32 %s15, 1
      %s21 = ssub.s32 %s15, 2
      %s22 = sadd.s32 %s15, 1
      %s23 = ssub.s32 %s15, %s22
      %p24 = scmp.eq.s32.totalorder %s23, 0
      %s26 = sadd.s32 %s25, 1
      %s27 = scalar_select %p24, %s25, %s26
      %p30 = pneg %p24
      %p31 = scmp.eq.s32.totalorder %s15, 1
      %p32 = por %p30, %p31
      %p33 = scmp.ne.s32.totalorder %s25, %s28
      %p34 = scmp.eq.s32.totalorder %s15, 0
      %p35 = por %p33, %p34
      %p36 = scmp.ne.s32.totalorder %s25, %s28
      %p37 = scmp.eq.s32.totalorder %s20, 1
      %p38 = por %p36, %p37
      %p39 = scmp.ne.s32.totalorder %s28, %s29
      %p40 = scmp.eq.s32.totalorder %s20, 0
      %p41 = por %p39, %p40
      %p42 = scmp.ne.s32.totalorder %s28, %s29
      %p43 = scmp.eq.s32.totalorder %s21, 1
      %p44 = por %p42, %p43
      %p46 = scmp.ne.s32.totalorder %s29, %s45
      %p47 = scmp.eq.s32.totalorder %s21, 0
      %p48 = por %p46, %p47
      %s50 = sadd.s32 %s49, 1
      %p53 = scmp.eq.s32.totalorder %s15, 1
      %p54 = scmp.ne.s32.totalorder %s49, %s51
      %p55 = scmp.eq.s32.totalorder %s15, 0
      %p56 = por %p54, %p55
      %p57 = scmp.ne.s32.totalorder %s49, %s51
      %p58 = scmp.eq.s32.totalorder %s20, 1
      %p59 = por %p57, %p58
      %p60 = scmp.ne.s32.totalorder %s51, %s52
      %p61 = scmp.eq.s32.totalorder %s20, 0
      %p62 = por %p60, %p61
      %p63 = scmp.ne.s32.totalorder %s51, %s52
      %p64 = scmp.eq.s32.totalorder %s21, 1
      %p65 = por %p63, %p64
      %p67 = scmp.ne.s32.totalorder %s52, %s66
      %p68 = scmp.eq.s32.totalorder %s21, 0
      %p69 = por %p67, %p68
      %s70 = ssub.s32 %s15, %s22
      %p71 = scmp.eq.s32.totalorder %s70, 0
      %s73 = sadd.s32 %s72, 1
      %s74 = scalar_select %p71, %s72, %s73
      %p77 = pneg %p71
      %p78 = scmp.eq.s32.totalorder %s15, 1
      %p79 = por %p77, %p78
      %p80 = scmp.ne.s32.totalorder %s72, %s75
      %p81 = scmp.eq.s32.totalorder %s15, 0
      %p82 = por %p80, %p81
      %p83 = scmp.ne.s32.totalorder %s72, %s75
      %p84 = scmp.eq.s32.totalorder %s20, 1
      %p85 = por %p83, %p84
      %p86 = scmp.ne.s32.totalorder %s75, %s76
      %p87 = scmp.eq.s32.totalorder %s20, 0
      %p88 = por %p86, %p87
      %p89 = scmp.ne.s32.totalorder %s75, %s76
      %p90 = scmp.eq.s32.totalorder %s21, 1
      %p91 = por %p89, %p90
      %p93 = scmp.ne.s32.totalorder %s76, %s92
      %p94 = scmp.eq.s32.totalorder %s21, 0
      %p95 = por %p93, %p94
      %p96 = scmp.le.s32.totalorder 1, %s15
      %p97 = scmp.lt.s32.totalorder %s15, 3
      %p98 = pnand %p96, %p97
      %p99 = pneg %p98
      // Predicated region
      $region9: #{tpu_custom_call.1} parent=5 // pred_check
        _
      $region10: #{tpu_custom_call.1} parent=5 // pred_check_branch
        %101 = sbr.rel (%p98) target = $region12
      $region11: #{tpu_custom_call.1} parent=5 // pred_region
        %s102 = ssub.s32 %s15, 1
        // Predicated region
        $region13: #{tpu_custom_call.1} parent=11 // pred_check
          %p103 = pneg %p62
        $region14: #{tpu_custom_call.1} parent=11 // pred_check_branch
          %105 = sbr.rel (%p103) target = $region16
        $region15: #{tpu_custom_call.1} parent=11 // pred_region
          %s107 = ssub.s32 1280, 1280
          %108 = vsyncadd [#allocation6], %s107
          %s109 = sshll.u32 [#allocation5], 4
          %s110 = int_to_ptr.vmem [resolvable:$true] %s109
          %115 = dma.hbm_to_vmem [thread:$0]  %s1, 1280, %s110, [#allocation6], 256, 256, 16
        $region16: #{tpu_custom_call.1} parent=11 // pred_fallthru
          _
      $region12: #{tpu_custom_call.1} parent=5 // pred_fallthru
        _
      %p116 = scmp.lt.s32.totalorder %s15, 2
      // Predicated region
      $region17: #{tpu_custom_call.1} parent=5 // pred_check
        %p117 = pneg %p116
      $region18: #{tpu_custom_call.1} parent=5 // pred_check_branch
        %119 = sbr.rel (%p117) target = $region20
      $region19: #{tpu_custom_call.1} parent=5 // pred_region
        // Predicated region
        $region21: #{tpu_custom_call.1} parent=19 // pred_check
          %p120 = pneg %p35
        $region22: #{tpu_custom_call.1} parent=19 // pred_check_branch
          %122 = sbr.rel (%p120) target = $region24
        $region23: #{tpu_custom_call.1} parent=19 // pred_region
          %s123 = sand.u32 %s25, 1
          %s124 = scalar_lea.sflag [#allocation3], %s123
          %s125 = sand.u32 %s25, 1
          %s126 = smul.addr %s125, 8
          %s127 = scalar_lea.vmem [#allocation2], %s126
          %s129 = ssub.s32 128, 128
          %130 = vsyncadd %s124, %s129
          %s131 = smul.addr %s15, 128
          %s132 = scalar_lea.hbm %s0, %s131
          %s134 = sshll.u32 %s127, 4
          %s135 = int_to_ptr.vmem [resolvable:$true] %s134
          %137 = dma.hbm_to_vmem [thread:$0]  %s132, 128, %s135, %s124
        $region24: #{tpu_custom_call.1} parent=19 // pred_fallthru
          _
      $region20: #{tpu_custom_call.1} parent=5 // pred_fallthru
        _
      %p138 = scmp.le.s32.totalorder 1, %s15
      %p139 = scmp.lt.s32.totalorder %s15, 3
      %p140 = pnand %p138, %p139
      %p141 = pneg %p140
      // Predicated region
      $region25: #{tpu_custom_call.1} parent=5 // pred_check
        _
      $region26: #{tpu_custom_call.1} parent=5 // pred_check_branch
        %143 = sbr.rel (%p140) target = $region28
      $region27: #{tpu_custom_call.1} parent=5 // pred_region
        %s144 = ssub.s32 %s15, 1
        %s145 = sand.u32 %s28, 1
        %s146 = scalar_lea.sflag [#allocation3], %s145
        %s147 = sand.u32 %s28, 1
        %s148 = smul.addr %s147, 8
        %s149 = scalar_lea.vmem [#allocation2], %s148
        // Predicated region
        $region29: #{tpu_custom_call.1} parent=27 // pred_check
          %p150 = pneg %p41
        $region30: #{tpu_custom_call.1} parent=27 // pred_check_branch
          %152 = sbr.rel (%p150) target = $region32
        $region31: #{tpu_custom_call.1} parent=27 // pred_region
          %153 = dma.done %s146, 128
        $region32: #{tpu_custom_call.1} parent=27 // pred_fallthru
          _
        // Predicated region
        $region33: #{tpu_custom_call.1} parent=27 // pred_check
          %p154 = pneg %p62
        $region34: #{tpu_custom_call.1} parent=27 // pred_check_branch
          %156 = sbr.rel (%p154) target = $region36
        $region35: #{tpu_custom_call.1} parent=27 // pred_region
          %157 = dma.done [#allocation6], 1280
        $region36: #{tpu_custom_call.1} parent=27 // pred_fallthru
          _
        %s158 = sand.u32 %s28, 1
        %s159 = scalar_lea.sflag [#allocation3], %s158
        %s160 = sand.u32 %s28, 1
        %s161 = smul.addr %s160, 8
        %s162 = scalar_lea.vmem [#allocation2], %s161
        %p163 = pneg %p41
        %p164 = pneg %p38
        %p165 = pneg %p62
        %p166 = pneg %p59
        %p167 = pneg %p88
        %p168 = pneg %p85
        %s169 = sand.u32 %s75, 1
        %s170 = scalar_lea.sflag [#allocation4], %s169
        %s171 = sand.u32 %s75, 1
        %s172 = smul.addr %s171, 8
        %s173 = scalar_lea.vmem [#allocation7], %s172
        %v174 = vld [vmem:[%s149] sm:$0xff]
        %v175 = vld [vmem:[#allocation5] sm:$0xff]
        %v176 = vld [vmem:[#allocation5 + $0x10] sm:$0xff]
        %v177 = vld [vmem:[#allocation5 + $0x20] sm:$0xff]
        %v178 = vld [vmem:[#allocation5 + $0x30] sm:$0xff]
        %v179 = vld [vmem:[#allocation5 + $0x40] ss:$0 sm:$0xff]
        %v180 = vld [vmem:[#allocation5 + $0x8] sm:$0xff]
        %v181 = vld [vmem:[#allocation5 + $0x18] sm:$0xff]
        %v182 = vld [vmem:[#allocation5 + $0x28] sm:$0xff]
        %v183 = vld [vmem:[#allocation5 + $0x38] sm:$0xff]
        %vm184 = vcmask 261120
        %v186 = vsel %vm184, %v174, 0
        %188 = vmatprep.subr.mxu0 0.0
        %189 = vmatpush1.msra.mxu0 %v180
        %190 = vmatprep.subr.mxu0 0.0
        %191 = vmatpush1.msra.mxu0 %v181
        %192 = vmatprep.subr.mxu0 0.0
        %193 = vmatpush1.msra.mxu0 %v182
        %194 = vmatprep.subr.mxu0 0.0
        %195 = vmatpush1.msra.mxu0 %v183
        %196 = vmatprep.subr.mxu0 0.0
        %197 = vmatpush1.msra.mxu0 0.0
        %198 = vmatprep.subr.mxu0 0.0
        %199 = vmatpush1.msra.mxu0 0.0
        %200 = vmatprep.subr.mxu0 0.0
        %201 = vmatpush1.msra.mxu0 0.0
        %202 = vmatprep.subr.mxu0 0.0
        %203 = vmatpush1.msra.mxu0 0.0
        %204 = vmatprep.subr.mxu0 0.0
        %205 = vmatpush1.msra.mxu0 0.0
        %206 = vmatprep.subr.mxu0 0.0
        %207 = vmatpush1.msra.mxu0 0.0
        %208 = vmatprep.subr.mxu0 0.0
        %209 = vmatpush1.msra.mxu0 0.0
        %210 = vmatprep.subr.mxu0 0.0
        %211 = vmatpush1.msra.mxu0 0.0
        %212 = vmatprep.subr.mxu0 0.0
        %213 = vmatpush1.msra.mxu0 0.0
        %214 = vmatprep.subr.mxu0 0.0
        %215 = vmatpush1.msra.mxu0 0.0
        %216 = vmatprep.subr.mxu0 0.0
        %217 = vmatpush1.msra.mxu0 0.0
        %218 = vmatprep.subr.mxu0 0.0
        %219 = vmatpush1.msra.mxu0 0.0
        %220 = vmatprep.subr.mxu0 0.0
        %221 = vmatpush1.msra.mxu0 0.0
        %222 = vmatprep.subr.mxu0 0.0
        %223 = vmatpush1.msra.mxu0 0.0
        %224 = vmatprep.subr.mxu0 0.0
        %225 = vmatpush1.msra.mxu0 0.0
        %226 = vmatprep.subr.mxu0 0.0
        %227 = vmatpush1.msra.mxu0 0.0
        %228 = vmatprep.subr.mxu0 0.0
        %229 = vmatpush1.msra.mxu0 0.0
        %230 = vmatprep.subr.mxu0 0.0
        %231 = vmatpush1.msra.mxu0 0.0
        %232 = vmatprep.subr.mxu0 0.0
        %233 = vmatpush1.msra.mxu0 0.0
        %234 = vmatprep.subr.mxu0 0.0
        %235 = vmatpush1.msra.mxu0 0.0
        %236 = vmatprep.subr.mxu0 0.0
        %237 = vmatpush1.msra.mxu0 0.0
        %238 = vmatprep.subr.mxu0 0.0
        %239 = vmatpush1.msra.mxu0 0.0
        %240 = vmatprep.subr.mxu0 0.0
        %241 = vmatpush1.msra.mxu0 0.0
        %242 = vmatprep.subr.mxu0 0.0
        %243 = vmatpush1.msra.mxu0 0.0
        %244 = vmatprep.subr.mxu0 0.0
        %245 = vmatpush1.msra.mxu0 0.0
        %246 = vmatprep.subr.mxu0 0.0
        %247 = vmatpush1.msra.mxu0 0.0
        %248 = vmatprep.subr.mxu0 0.0
        %249 = vmatpush1.msra.mxu0 0.0
        %250 = vmatprep.subr.mxu0 0.0
        %251 = vmatpush1.msra.mxu0 0.0
        %252 = vmatprep.mubr.f32.mxu0 0.0
        %253 = vmatmul.mubr.f32.gmra.mrb[0].mxu0 %v186
        %v254 = vpop.f32.mrb[0].mxu0
        %v255 = vadd.f32 0.0, %v254
        %v256 = vpop.f32.mrb[0].mxu0
        %257 = vdwg.mxu0
        %v258 = vlaneseq
        %v259 = vshrl.u32 %v258, 7
        %v260 = vlaneseq
        %v261 = vand.u32 %v260, 127
        %vm262 = vcmp.le.s32.totalorder %v261, %v259
        %v263 = vsel %vm262, 0.0, -1e+30
        %265 = vrot.lane.b32.xlu0 %v255, 96
        %v266 = vpop.permute.xlu0 %265
        %vm267 = vcmask 64512
        %v268 = vsel %vm267, %v255, 0
        %v270 = vsel %vm267, %v266, 0
        %272 = vmatprep.subr.mxu0 0.0
        %273 = vmatpush1.xpose.msra.mxu0 %v270
        %274 = vmatprep.subr.mxu0 0.0
        %275 = vmatpush1.xpose.msra.mxu0 0.0
        %276 = vmatprep.subr.mxu0 0.0
        %277 = vmatpush1.xpose.msra.mxu0 0.0
        %278 = vmatprep.subr.mxu0 0.0
        %279 = vmatpush1.xpose.msra.mxu0 0.0
        %280 = vmatprep.subr.mxu0 0.0
        %281 = vmatpush1.xpose.msra.mxu0 0.0
        %282 = vmatprep.subr.mxu0 0.0
        %283 = vmatpush1.xpose.msra.mxu0 0.0
        %284 = vmatprep.subr.mxu0 0.0
        %285 = vmatpush1.xpose.msra.mxu0 0.0
        %286 = vmatprep.subr.mxu0 0.0
        %287 = vmatpush1.xpose.msra.mxu0 0.0
        %288 = vmatprep.subr.mxu0 0.0
        %289 = vmatpush1.xpose.msra.mxu0 0.0
        %290 = vmatprep.subr.mxu0 0.0
        %291 = vmatpush1.xpose.msra.mxu0 0.0
        %292 = vmatprep.subr.mxu0 0.0
        %293 = vmatpush1.xpose.msra.mxu0 0.0
        %294 = vmatprep.subr.mxu0 0.0
        %295 = vmatpush1.xpose.msra.mxu0 0.0
        %296 = vmatprep.subr.mxu0 0.0
        %297 = vmatpush1.xpose.msra.mxu0 0.0
        %298 = vmatprep.subr.mxu0 0.0
        %299 = vmatpush1.xpose.msra.mxu0 0.0
        %300 = vmatprep.subr.mxu0 0.0
        %301 = vmatpush1.xpose.msra.mxu0 0.0
        %302 = vmatprep.subr.mxu0 0.0
        %303 = vmatpush1.xpose.msra.mxu0 0.0
        %304 = vmatprep.subr.mxu0 0.0
        %305 = vmatpush1.xpose.msra.mxu0 0.0
        %306 = vmatprep.subr.mxu0 0.0
        %307 = vmatpush1.xpose.msra.mxu0 0.0
        %308 = vmatprep.subr.mxu0 0.0
        %309 = vmatpush1.xpose.msra.mxu0 0.0
        %310 = vmatprep.subr.mxu0 0.0
        %311 = vmatpush1.xpose.msra.mxu0 0.0
        %312 = vmatprep.subr.mxu0 0.0
        %313 = vmatpush1.xpose.msra.mxu0 0.0
        %314 = vmatprep.subr.mxu0 0.0
        %315 = vmatpush1.xpose.msra.mxu0 0.0
        %316 = vmatprep.subr.mxu0 0.0
        %317 = vmatpush1.xpose.msra.mxu0 0.0
        %318 = vmatprep.subr.mxu0 0.0
        %319 = vmatpush1.xpose.msra.mxu0 0.0
        %320 = vmatprep.subr.mxu0 0.0
        %321 = vmatpush1.xpose.msra.mxu0 0.0
        %322 = vmatprep.subr.mxu0 0.0
        %323 = vmatpush1.xpose.msra.mxu0 0.0
        %324 = vmatprep.subr.mxu0 0.0
        %325 = vmatpush1.xpose.msra.mxu0 0.0
        %326 = vmatprep.subr.mxu0 0.0
        %327 = vmatpush1.xpose.msra.mxu0 0.0
        %328 = vmatprep.subr.mxu0 0.0
        %329 = vmatpush1.xpose.msra.mxu0 0.0
        %330 = vmatprep.subr.mxu0 0.0
        %331 = vmatpush1.xpose.msra.mxu0 0.0
        %332 = vmatprep.subr.mxu0 0.0
        %333 = vmatpush1.xpose.msra.mxu0 0.0
        %334 = vmatprep.subr.mxu0 0.0
        %335 = vmatpush1.xpose.msra.mxu0 0.0
        %336 = vmatprep.mubr.f32.mxu0 0.0
        %337 = vmatmul.mubr.f32.gmra.mrb[0].mxu0 %v268
        %v338 = vpop.f32.mrb[0].mxu0
        %v339 = vadd.f32 %v263, %v338
        %v340 = vpop.f32.mrb[0].mxu0
        %341 = vdwg.mxu0
        %v342 = vsel %vm267, %v339, -inf
        %343 = vmax.xlane.f32.xlu0 %v342
        %v344 = vpop.xlane.xlu0 %343
        %v345 = vsub.f32 %v339, %v344
        %v346 = vmul.f32 %v345, 1.442695
        %v347 = vpow.pop %v346
        %v348 = vsel %vm267, %v347, 0.0
        %349 = vadd.xlane.f32.xlu0 %v348
        %v350 = vpop.xlane.xlu0 %349
        %v351 = vrcp.pop %v350
        %v352 = vmul.f32 %v347, %v351
        %353 = vrot.lane.b32.xlu0 %v255, 64
        %v354 = vpop.permute.xlu0 %353
        %v357 = vsel %vm267, %v352, 0
        %359 = vmatprep.subr.mxu0 0.0
        %360 = vmatpush1.msra.mxu0 %v354
        %361 = vmatprep.subr.mxu0 0.0
        %362 = vmatpush1.msra.mxu0 0.0
        %363 = vmatprep.subr.mxu0 0.0
        %364 = vmatpush1.msra.mxu0 0.0
        %365 = vmatprep.subr.mxu0 0.0
        %366 = vmatpush1.msra.mxu0 0.0
        %367 = vmatprep.subr.mxu0 0.0
        %368 = vmatpush1.msra.mxu0 0.0
        %369 = vmatprep.subr.mxu0 0.0
        %370 = vmatpush1.msra.mxu0 0.0
        %371 = vmatprep.subr.mxu0 0.0
        %372 = vmatpush1.msra.mxu0 0.0
        %373 = vmatprep.subr.mxu0 0.0
        %374 = vmatpush1.msra.mxu0 0.0
        %375 = vmatprep.subr.mxu0 0.0
        %376 = vmatpush1.msra.mxu0 0.0
        %377 = vmatprep.subr.mxu0 0.0
        %378 = vmatpush1.msra.mxu0 0.0
        %379 = vmatprep.subr.mxu0 0.0
        %380 = vmatpush1.msra.mxu0 0.0
        %381 = vmatprep.subr.mxu0 0.0
        %382 = vmatpush1.msra.mxu0 0.0
        %383 = vmatprep.subr.mxu0 0.0
        %384 = vmatpush1.msra.mxu0 0.0
        %385 = vmatprep.subr.mxu0 0.0
        %386 = vmatpush1.msra.mxu0 0.0
        %387 = vmatprep.subr.mxu0 0.0
        %388 = vmatpush1.msra.mxu0 0.0
        %389 = vmatprep.subr.mxu0 0.0
        %390 = vmatpush1.msra.mxu0 0.0
        %391 = vmatprep.subr.mxu0 0.0
        %392 = vmatpush1.msra.mxu0 0.0
        %393 = vmatprep.subr.mxu0 0.0
        %394 = vmatpush1.msra.mxu0 0.0
        %395 = vmatprep.subr.mxu0 0.0
        %396 = vmatpush1.msra.mxu0 0.0
        %397 = vmatprep.subr.mxu0 0.0
        %398 = vmatpush1.msra.mxu0 0.0
        %399 = vmatprep.subr.mxu0 0.0
        %400 = vmatpush1.msra.mxu0 0.0
        %401 = vmatprep.subr.mxu0 0.0
        %402 = vmatpush1.msra.mxu0 0.0
        %403 = vmatprep.subr.mxu0 0.0
        %404 = vmatpush1.msra.mxu0 0.0
        %405 = vmatprep.subr.mxu0 0.0
        %406 = vmatpush1.msra.mxu0 0.0
        %407 = vmatprep.subr.mxu0 0.0
        %408 = vmatpush1.msra.mxu0 0.0
        %409 = vmatprep.subr.mxu0 0.0
        %410 = vmatpush1.msra.mxu0 0.0
        %411 = vmatprep.subr.mxu0 0.0
        %412 = vmatpush1.msra.mxu0 0.0
        %413 = vmatprep.subr.mxu0 0.0
        %414 = vmatpush1.msra.mxu0 0.0
        %415 = vmatprep.subr.mxu0 0.0
        %416 = vmatpush1.msra.mxu0 0.0
        %417 = vmatprep.subr.mxu0 0.0
        %418 = vmatpush1.msra.mxu0 0.0
        %419 = vmatprep.subr.mxu0 0.0
        %420 = vmatpush1.msra.mxu0 0.0
        %421 = vmatprep.subr.mxu0 0.0
        %422 = vmatpush1.msra.mxu0 0.0
        %423 = vmatprep.mubr.f32.mxu0 0.0
        %424 = vmatmul.mubr.f32.gmra.mrb[0].mxu0 %v357
        %v425 = vpop.f32.mrb[0].mxu0
        %v426 = vadd.f32 0.0, %v425
        %v427 = vpop.f32.mrb[0].mxu0
        %428 = vdwg.mxu0
        %429 = vrot.lane.b32.xlu0 %v255, 120
        %v430 = vpop.permute.xlu0 %429
        %431 = vrot.lane.b32.xlu0 %v255, 88
        %v432 = vpop.permute.xlu0 %431
        %v433 = vsel %vm267, %v430, 0
        %v435 = vsel %vm267, %v432, 0
        %437 = vmatprep.subr.mxu0 0.0
        %438 = vmatpush1.xpose.msra.mxu0 %v435
        %439 = vmatprep.subr.mxu0 0.0
        %440 = vmatpush1.xpose.msra.mxu0 0.0
        %441 = vmatprep.subr.mxu0 0.0
        %442 = vmatpush1.xpose.msra.mxu0 0.0
        %443 = vmatprep.subr.mxu0 0.0
        %444 = vmatpush1.xpose.msra.mxu0 0.0
        %445 = vmatprep.subr.mxu0 0.0
        %446 = vmatpush1.xpose.msra.mxu0 0.0
        %447 = vmatprep.subr.mxu0 0.0
        %448 = vmatpush1.xpose.msra.mxu0 0.0
        %449 = vmatprep.subr.mxu0 0.0
        %450 = vmatpush1.xpose.msra.mxu0 0.0
        %451 = vmatprep.subr.mxu0 0.0
        %452 = vmatpush1.xpose.msra.mxu0 0.0
        %453 = vmatprep.subr.mxu0 0.0
        %454 = vmatpush1.xpose.msra.mxu0 0.0
        %455 = vmatprep.subr.mxu0 0.0
        %456 = vmatpush1.xpose.msra.mxu0 0.0
        %457 = vmatprep.subr.mxu0 0.0
        %458 = vmatpush1.xpose.msra.mxu0 0.0
        %459 = vmatprep.subr.mxu0 0.0
        %460 = vmatpush1.xpose.msra.mxu0 0.0
        %461 = vmatprep.subr.mxu0 0.0
        %462 = vmatpush1.xpose.msra.mxu0 0.0
        %463 = vmatprep.subr.mxu0 0.0
        %464 = vmatpush1.xpose.msra.mxu0 0.0
        %465 = vmatprep.subr.mxu0 0.0
        %466 = vmatpush1.xpose.msra.mxu0 0.0
        %467 = vmatprep.subr.mxu0 0.0
        %468 = vmatpush1.xpose.msra.mxu0 0.0
        %469 = vmatprep.subr.mxu0 0.0
        %470 = vmatpush1.xpose.msra.mxu0 0.0
        %471 = vmatprep.subr.mxu0 0.0
        %472 = vmatpush1.xpose.msra.mxu0 0.0
        %473 = vmatprep.subr.mxu0 0.0
        %474 = vmatpush1.xpose.msra.mxu0 0.0
        %475 = vmatprep.subr.mxu0 0.0
        %476 = vmatpush1.xpose.msra.mxu0 0.0
        %477 = vmatprep.subr.mxu0 0.0
        %478 = vmatpush1.xpose.msra.mxu0 0.0
        %479 = vmatprep.subr.mxu0 0.0
        %480 = vmatpush1.xpose.msra.mxu0 0.0
        %481 = vmatprep.subr.mxu0 0.0
        %482 = vmatpush1.xpose.msra.mxu0 0.0
        %483 = vmatprep.subr.mxu0 0.0
        %484 = vmatpush1.xpose.msra.mxu0 0.0
        %485 = vmatprep.subr.mxu0 0.0
        %486 = vmatpush1.xpose.msra.mxu0 0.0
        %487 = vmatprep.subr.mxu0 0.0
        %488 = vmatpush1.xpose.msra.mxu0 0.0
        %489 = vmatprep.subr.mxu0 0.0
        %490 = vmatpush1.xpose.msra.mxu0 0.0
        %491 = vmatprep.subr.mxu0 0.0
        %492 = vmatpush1.xpose.msra.mxu0 0.0
        %493 = vmatprep.subr.mxu0 0.0
        %494 = vmatpush1.xpose.msra.mxu0 0.0
        %495 = vmatprep.subr.mxu0 0.0
        %496 = vmatpush1.xpose.msra.mxu0 0.0
        %497 = vmatprep.subr.mxu0 0.0
        %498 = vmatpush1.xpose.msra.mxu0 0.0
        %499 = vmatprep.subr.mxu0 0.0
        %500 = vmatpush1.xpose.msra.mxu0 0.0
        %501 = vmatprep.mubr.f32.mxu0 0.0
        %502 = vmatmul.mubr.f32.gmra.mrb[0].mxu0 %v433
        %v503 = vpop.f32.mrb[0].mxu0
        %v504 = vadd.f32 %v263, %v503
        %v505 = vpop.f32.mrb[0].mxu0
        %506 = vdwg.mxu0
        %v507 = vsel %vm267, %v504, -inf
        %508 = vmax.xlane.f32.xlu0 %v507
        %v509 = vpop.xlane.xlu0 %508
        %v510 = vsub.f32 %v504, %v509
        %v511 = vmul.f32 %v510, 1.442695
        %v512 = vpow.pop %v511
        %v513 = vsel %vm267, %v512, 0.0
        %514 = vadd.xlane.f32.xlu0 %v513
        %v515 = vpop.xlane.xlu0 %514
        %v516 = vrcp.pop %v515
        %v517 = vmul.f32 %v512, %v516
        %518 = vrot.lane.b32.xlu0 %v255, 56
        %v519 = vpop.permute.xlu0 %518
        %v522 = vsel %vm267, %v517, 0
        %524 = vmatprep.subr.mxu0 0.0
        %525 = vmatpush1.msra.mxu0 %v519
        %526 = vmatprep.subr.mxu0 0.0
        %527 = vmatpush1.msra.mxu0 0.0
        %528 = vmatprep.subr.mxu0 0.0
        %529 = vmatpush1.msra.mxu0 0.0
        %530 = vmatprep.subr.mxu0 0.0
        %531 = vmatpush1.msra.mxu0 0.0
        %532 = vmatprep.subr.mxu0 0.0
        %533 = vmatpush1.msra.mxu0 0.0
        %534 = vmatprep.subr.mxu0 0.0
        %535 = vmatpush1.msra.mxu0 0.0
        %536 = vmatprep.subr.mxu0 0.0
        %537 = vmatpush1.msra.mxu0 0.0
        %538 = vmatprep.subr.mxu0 0.0
        %539 = vmatpush1.msra.mxu0 0.0
        %540 = vmatprep.subr.mxu0 0.0
        %541 = vmatpush1.msra.mxu0 0.0
        %542 = vmatprep.subr.mxu0 0.0
        %543 = vmatpush1.msra.mxu0 0.0
        %544 = vmatprep.subr.mxu0 0.0
        %545 = vmatpush1.msra.mxu0 0.0
        %546 = vmatprep.subr.mxu0 0.0
        %547 = vmatpush1.msra.mxu0 0.0
        %548 = vmatprep.subr.mxu0 0.0
        %549 = vmatpush1.msra.mxu0 0.0
        %550 = vmatprep.subr.mxu0 0.0
        %551 = vmatpush1.msra.mxu0 0.0
        %552 = vmatprep.subr.mxu0 0.0
        %553 = vmatpush1.msra.mxu0 0.0
        %554 = vmatprep.subr.mxu0 0.0
        %555 = vmatpush1.msra.mxu0 0.0
        %556 = vmatprep.subr.mxu0 0.0
        %557 = vmatpush1.msra.mxu0 0.0
        %558 = vmatprep.subr.mxu0 0.0
        %559 = vmatpush1.msra.mxu0 0.0
        %560 = vmatprep.subr.mxu0 0.0
        %561 = vmatpush1.msra.mxu0 0.0
        %562 = vmatprep.subr.mxu0 0.0
        %563 = vmatpush1.msra.mxu0 0.0
        %564 = vmatprep.subr.mxu0 0.0
        %565 = vmatpush1.msra.mxu0 0.0
        %566 = vmatprep.subr.mxu0 0.0
        %567 = vmatpush1.msra.mxu0 0.0
        %568 = vmatprep.subr.mxu0 0.0
        %569 = vmatpush1.msra.mxu0 0.0
        %570 = vmatprep.subr.mxu0 0.0
        %571 = vmatpush1.msra.mxu0 0.0
        %572 = vmatprep.subr.mxu0 0.0
        %573 = vmatpush1.msra.mxu0 0.0
        %574 = vmatprep.subr.mxu0 0.0
        %575 = vmatpush1.msra.mxu0 0.0
        %576 = vmatprep.subr.mxu0 0.0
        %577 = vmatpush1.msra.mxu0 0.0
        %578 = vmatprep.subr.mxu0 0.0
        %579 = vmatpush1.msra.mxu0 0.0
        %580 = vmatprep.subr.mxu0 0.0
        %581 = vmatpush1.msra.mxu0 0.0
        %582 = vmatprep.subr.mxu0 0.0
        %583 = vmatpush1.msra.mxu0 0.0
        %584 = vmatprep.subr.mxu0 0.0
        %585 = vmatpush1.msra.mxu0 0.0
        %586 = vmatprep.subr.mxu0 0.0
        %587 = vmatpush1.msra.mxu0 0.0
        %588 = vmatprep.mubr.f32.mxu0 0.0
        %589 = vmatmul.mubr.f32.gmra.mrb[0].mxu0 %v522
        %v590 = vpop.f32.mrb[0].mxu0
        %v591 = vadd.f32 0.0, %v590
        %v592 = vpop.f32.mrb[0].mxu0
        %593 = vdwg.mxu0
        %594 = vrot.lane.b32.xlu0 %v255, 112
        %v595 = vpop.permute.xlu0 %594
        %596 = vrot.lane.b32.xlu0 %v255, 80
        %v597 = vpop.permute.xlu0 %596
        %v598 = vsel %vm267, %v595, 0
        %v600 = vsel %vm267, %v597, 0
        %602 = vmatprep.subr.mxu0 0.0
        %603 = vmatpush1.xpose.msra.mxu0 %v600
        %604 = vmatprep.subr.mxu0 0.0
        %605 = vmatpush1.xpose.msra.mxu0 0.0
        %606 = vmatprep.subr.mxu0 0.0
        %607 = vmatpush1.xpose.msra.mxu0 0.0
        %608 = vmatprep.subr.mxu0 0.0
        %609 = vmatpush1.xpose.msra.mxu0 0.0
        %610 = vmatprep.subr.mxu0 0.0
        %611 = vmatpush1.xpose.msra.mxu0 0.0
        %612 = vmatprep.subr.mxu0 0.0
        %613 = vmatpush1.xpose.msra.mxu0 0.0
        %614 = vmatprep.subr.mxu0 0.0
        %615 = vmatpush1.xpose.msra.mxu0 0.0
        %616 = vmatprep.subr.mxu0 0.0
        %617 = vmatpush1.xpose.msra.mxu0 0.0
        %618 = vmatprep.subr.mxu0 0.0
        %619 = vmatpush1.xpose.msra.mxu0 0.0
        %620 = vmatprep.subr.mxu0 0.0
        %621 = vmatpush1.xpose.msra.mxu0 0.0
        %622 = vmatprep.subr.mxu0 0.0
        %623 = vmatpush1.xpose.msra.mxu0 0.0
        %624 = vmatprep.subr.mxu0 0.0
        %625 = vmatpush1.xpose.msra.mxu0 0.0
        %626 = vmatprep.subr.mxu0 0.0
        %627 = vmatpush1.xpose.msra.mxu0 0.0
        %628 = vmatprep.subr.mxu0 0.0
        %629 = vmatpush1.xpose.msra.mxu0 0.0
        %630 = vmatprep.subr.mxu0 0.0
        %631 = vmatpush1.xpose.msra.mxu0 0.0
        %632 = vmatprep.subr.mxu0 0.0
        %633 = vmatpush1.xpose.msra.mxu0 0.0
        %634 = vmatprep.subr.mxu0 0.0
        %635 = vmatpush1.xpose.msra.mxu0 0.0
        %636 = vmatprep.subr.mxu0 0.0
        %637 = vmatpush1.xpose.msra.mxu0 0.0
        %638 = vmatprep.subr.mxu0 0.0
        %639 = vmatpush1.xpose.msra.mxu0 0.0
        %640 = vmatprep.subr.mxu0 0.0
        %641 = vmatpush1.xpose.msra.mxu0 0.0
        %642 = vmatprep.subr.mxu0 0.0
        %643 = vmatpush1.xpose.msra.mxu0 0.0
        %644 = vmatprep.subr.mxu0 0.0
        %645 = vmatpush1.xpose.msra.mxu0 0.0
        %646 = vmatprep.subr.mxu0 0.0
        %647 = vmatpush1.xpose.msra.mxu0 0.0
        %648 = vmatprep.subr.mxu0 0.0
        %649 = vmatpush1.xpose.msra.mxu0 0.0
        %650 = vmatprep.subr.mxu0 0.0
        %651 = vmatpush1.xpose.msra.mxu0 0.0
        %652 = vmatprep.subr.mxu0 0.0
        %653 = vmatpush1.xpose.msra.mxu0 0.0
        %654 = vmatprep.subr.mxu0 0.0
        %655 = vmatpush1.xpose.msra.mxu0 0.0
        %656 = vmatprep.subr.mxu0 0.0
        %657 = vmatpush1.xpose.msra.mxu0 0.0
        %658 = vmatprep.subr.mxu0 0.0
        %659 = vmatpush1.xpose.msra.mxu0 0.0
        %660 = vmatprep.subr.mxu0 0.0
        %661 = vmatpush1.xpose.msra.mxu0 0.0
        %662 = vmatprep.subr.mxu0 0.0
        %663 = vmatpush1.xpose.msra.mxu0 0.0
        %664 = vmatprep.subr.mxu0 0.0
        %665 = vmatpush1.xpose.msra.mxu0 0.0
        %666 = vmatprep.mubr.f32.mxu0 0.0
        %667 = vmatmul.mubr.f32.gmra.mrb[0].mxu0 %v598
        %v668 = vpop.f32.mrb[0].mxu0
        %v669 = vadd.f32 %v263, %v668
        %v670 = vpop.f32.mrb[0].mxu0
        %671 = vdwg.mxu0
        %v672 = vsel %vm267, %v669, -inf
        %673 = vmax.xlane.f32.xlu0 %v672
        %v674 = vpop.xlane.xlu0 %673
        %v675 = vsub.f32 %v669, %v674
        %v676 = vmul.f32 %v675, 1.442695
        %v677 = vpow.pop %v676
        %v678 = vsel %vm267, %v677, 0.0
        %679 = vadd.xlane.f32.xlu0 %v678
        %v680 = vpop.xlane.xlu0 %679
        %v681 = vrcp.pop %v680
        %v682 = vmul.f32 %v677, %v681
        %683 = vrot.lane.b32.xlu0 %v255, 48
        %v684 = vpop.permute.xlu0 %683
        %v687 = vsel %vm267, %v682, 0
        %689 = vmatprep.subr.mxu0 0.0
        %690 = vmatpush1.msra.mxu0 %v684
        %691 = vmatprep.subr.mxu0 0.0
        %692 = vmatpush1.msra.mxu0 0.0
        %693 = vmatprep.subr.mxu0 0.0
        %694 = vmatpush1.msra.mxu0 0.0
        %695 = vmatprep.subr.mxu0 0.0
        %696 = vmatpush1.msra.mxu0 0.0
        %697 = vmatprep.subr.mxu0 0.0
        %698 = vmatpush1.msra.mxu0 0.0
        %699 = vmatprep.subr.mxu0 0.0
        %700 = vmatpush1.msra.mxu0 0.0
        %701 = vmatprep.subr.mxu0 0.0
        %702 = vmatpush1.msra.mxu0 0.0
        %703 = vmatprep.subr.mxu0 0.0
        %704 = vmatpush1.msra.mxu0 0.0
        %705 = vmatprep.subr.mxu0 0.0
        %706 = vmatpush1.msra.mxu0 0.0
        %707 = vmatprep.subr.mxu0 0.0
        %708 = vmatpush1.msra.mxu0 0.0
        %709 = vmatprep.subr.mxu0 0.0
        %710 = vmatpush1.msra.mxu0 0.0
        %711 = vmatprep.subr.mxu0 0.0
        %712 = vmatpush1.msra.mxu0 0.0
        %713 = vmatprep.subr.mxu0 0.0
        %714 = vmatpush1.msra.mxu0 0.0
        %715 = vmatprep.subr.mxu0 0.0
        %716 = vmatpush1.msra.mxu0 0.0
        %717 = vmatprep.subr.mxu0 0.0
        %718 = vmatpush1.msra.mxu0 0.0
        %719 = vmatprep.subr.mxu0 0.0
        %720 = vmatpush1.msra.mxu0 0.0
        %721 = vmatprep.subr.mxu0 0.0
        %722 = vmatpush1.msra.mxu0 0.0
        %723 = vmatprep.subr.mxu0 0.0
        %724 = vmatpush1.msra.mxu0 0.0
        %725 = vmatprep.subr.mxu0 0.0
        %726 = vmatpush1.msra.mxu0 0.0
        %727 = vmatprep.subr.mxu0 0.0
        %728 = vmatpush1.msra.mxu0 0.0
        %729 = vmatprep.subr.mxu0 0.0
        %730 = vmatpush1.msra.mxu0 0.0
        %731 = vmatprep.subr.mxu0 0.0
        %732 = vmatpush1.msra.mxu0 0.0
        %733 = vmatprep.subr.mxu0 0.0
        %734 = vmatpush1.msra.mxu0 0.0
        %735 = vmatprep.subr.mxu0 0.0
        %736 = vmatpush1.msra.mxu0 0.0
        %737 = vmatprep.subr.mxu0 0.0
        %738 = vmatpush1.msra.mxu0 0.0
        %739 = vmatprep.subr.mxu0 0.0
        %740 = vmatpush1.msra.mxu0 0.0
        %741 = vmatprep.subr.mxu0 0.0
        %742 = vmatpush1.msra.mxu0 0.0
        %743 = vmatprep.subr.mxu0 0.0
        %744 = vmatpush1.msra.mxu0 0.0
        %745 = vmatprep.subr.mxu0 0.0
        %746 = vmatpush1.msra.mxu0 0.0
        %747 = vmatprep.subr.mxu0 0.0
        %748 = vmatpush1.msra.mxu0 0.0
        %749 = vmatprep.subr.mxu0 0.0
        %750 = vmatpush1.msra.mxu0 0.0
        %751 = vmatprep.subr.mxu0 0.0
        %752 = vmatpush1.msra.mxu0 0.0
        %753 = vmatprep.mubr.f32.mxu0 0.0
        %754 = vmatmul.mubr.f32.gmra.mrb[0].mxu0 %v687
        %v755 = vpop.f32.mrb[0].mxu0
        %v756 = vadd.f32 0.0, %v755
        %v757 = vpop.f32.mrb[0].mxu0
        %758 = vdwg.mxu0
        %759 = vrot.lane.b32.xlu0 %v255, 104
        %v760 = vpop.permute.xlu0 %759
        %761 = vrot.lane.b32.xlu0 %v255, 72
        %v762 = vpop.permute.xlu0 %761
        %v763 = vsel %vm267, %v760, 0
        %v765 = vsel %vm267, %v762, 0
        %767 = vmatprep.subr.mxu0 0.0
        %768 = vmatpush1.xpose.msra.mxu0 %v765
        %769 = vmatprep.subr.mxu0 0.0
        %770 = vmatpush1.xpose.msra.mxu0 0.0
        %771 = vmatprep.subr.mxu0 0.0
        %772 = vmatpush1.xpose.msra.mxu0 0.0
        %773 = vmatprep.subr.mxu0 0.0
        %774 = vmatpush1.xpose.msra.mxu0 0.0
        %775 = vmatprep.subr.mxu0 0.0
        %776 = vmatpush1.xpose.msra.mxu0 0.0
        %777 = vmatprep.subr.mxu0 0.0
        %778 = vmatpush1.xpose.msra.mxu0 0.0
        %779 = vmatprep.subr.mxu0 0.0
        %780 = vmatpush1.xpose.msra.mxu0 0.0
        %781 = vmatprep.subr.mxu0 0.0
        %782 = vmatpush1.xpose.msra.mxu0 0.0
        %783 = vmatprep.subr.mxu0 0.0
        %784 = vmatpush1.xpose.msra.mxu0 0.0
        %785 = vmatprep.subr.mxu0 0.0
        %786 = vmatpush1.xpose.msra.mxu0 0.0
        %787 = vmatprep.subr.mxu0 0.0
        %788 = vmatpush1.xpose.msra.mxu0 0.0
        %789 = vmatprep.subr.mxu0 0.0
        %790 = vmatpush1.xpose.msra.mxu0 0.0
        %791 = vmatprep.subr.mxu0 0.0
        %792 = vmatpush1.xpose.msra.mxu0 0.0
        %793 = vmatprep.subr.mxu0 0.0
        %794 = vmatpush1.xpose.msra.mxu0 0.0
        %795 = vmatprep.subr.mxu0 0.0
        %796 = vmatpush1.xpose.msra.mxu0 0.0
        %797 = vmatprep.subr.mxu0 0.0
        %798 = vmatpush1.xpose.msra.mxu0 0.0
        %799 = vmatprep.subr.mxu0 0.0
        %800 = vmatpush1.xpose.msra.mxu0 0.0
        %801 = vmatprep.subr.mxu0 0.0
        %802 = vmatpush1.xpose.msra.mxu0 0.0
        %803 = vmatprep.subr.mxu0 0.0
        %804 = vmatpush1.xpose.msra.mxu0 0.0
        %805 = vmatprep.subr.mxu0 0.0
        %806 = vmatpush1.xpose.msra.mxu0 0.0
        %807 = vmatprep.subr.mxu0 0.0
        %808 = vmatpush1.xpose.msra.mxu0 0.0
        %809 = vmatprep.subr.mxu0 0.0
        %810 = vmatpush1.xpose.msra.mxu0 0.0
        %811 = vmatprep.subr.mxu0 0.0
        %812 = vmatpush1.xpose.msra.mxu0 0.0
        %813 = vmatprep.subr.mxu0 0.0
        %814 = vmatpush1.xpose.msra.mxu0 0.0
        %815 = vmatprep.subr.mxu0 0.0
        %816 = vmatpush1.xpose.msra.mxu0 0.0
        %817 = vmatprep.subr.mxu0 0.0
        %818 = vmatpush1.xpose.msra.mxu0 0.0
        %819 = vmatprep.subr.mxu0 0.0
        %820 = vmatpush1.xpose.msra.mxu0 0.0
        %821 = vmatprep.subr.mxu0 0.0
        %822 = vmatpush1.xpose.msra.mxu0 0.0
        %823 = vmatprep.subr.mxu0 0.0
        %824 = vmatpush1.xpose.msra.mxu0 0.0
        %825 = vmatprep.subr.mxu0 0.0
        %826 = vmatpush1.xpose.msra.mxu0 0.0
        %827 = vmatprep.subr.mxu0 0.0
        %828 = vmatpush1.xpose.msra.mxu0 0.0
        %829 = vmatprep.subr.mxu0 0.0
        %830 = vmatpush1.xpose.msra.mxu0 0.0
        %831 = vmatprep.mubr.f32.mxu0 0.0
        %832 = vmatmul.mubr.f32.gmra.mrb[0].mxu0 %v763
        %v833 = vpop.f32.mrb[0].mxu0
        %v834 = vadd.f32 %v263, %v833
        %v835 = vpop.f32.mrb[0].mxu0
        %836 = vdwg.mxu0
        %v837 = vsel %vm267, %v834, -inf
        %838 = vmax.xlane.f32.xlu0 %v837
        %v839 = vpop.xlane.xlu0 %838
        %v840 = vsub.f32 %v834, %v839
        %v841 = vmul.f32 %v840, 1.442695
        %v842 = vpow.pop %v841
        %v843 = vsel %vm267, %v842, 0.0
        %844 = vadd.xlane.f32.xlu0 %v843
        %v845 = vpop.xlane.xlu0 %844
        %v846 = vrcp.pop %v845
        %v847 = vmul.f32 %v842, %v846
        %848 = vrot.lane.b32.xlu0 %v255, 40
        %v849 = vpop.permute.xlu0 %848
        %v852 = vsel %vm267, %v847, 0
        %854 = vmatprep.subr.mxu0 0.0
        %855 = vmatpush1.msra.mxu0 %v849
        %856 = vmatprep.subr.mxu0 0.0
        %857 = vmatpush1.msra.mxu0 0.0
        %858 = vmatprep.subr.mxu0 0.0
        %859 = vmatpush1.msra.mxu0 0.0
        %860 = vmatprep.subr.mxu0 0.0
        %861 = vmatpush1.msra.mxu0 0.0
        %862 = vmatprep.subr.mxu0 0.0
        %863 = vmatpush1.msra.mxu0 0.0
        %864 = vmatprep.subr.mxu0 0.0
        %865 = vmatpush1.msra.mxu0 0.0
        %866 = vmatprep.subr.mxu0 0.0
        %867 = vmatpush1.msra.mxu0 0.0
        %868 = vmatprep.subr.mxu0 0.0
        %869 = vmatpush1.msra.mxu0 0.0
        %870 = vmatprep.subr.mxu0 0.0
        %871 = vmatpush1.msra.mxu0 0.0
        %872 = vmatprep.subr.mxu0 0.0
        %873 = vmatpush1.msra.mxu0 0.0
        %874 = vmatprep.subr.mxu0 0.0
        %875 = vmatpush1.msra.mxu0 0.0
        %876 = vmatprep.subr.mxu0 0.0
        %877 = vmatpush1.msra.mxu0 0.0
        %878 = vmatprep.subr.mxu0 0.0
        %879 = vmatpush1.msra.mxu0 0.0
        %880 = vmatprep.subr.mxu0 0.0
        %881 = vmatpush1.msra.mxu0 0.0
        %882 = vmatprep.subr.mxu0 0.0
        %883 = vmatpush1.msra.mxu0 0.0
        %884 = vmatprep.subr.mxu0 0.0
        %885 = vmatpush1.msra.mxu0 0.0
        %886 = vmatprep.subr.mxu0 0.0
        %887 = vmatpush1.msra.mxu0 0.0
        %888 = vmatprep.subr.mxu0 0.0
        %889 = vmatpush1.msra.mxu0 0.0
        %890 = vmatprep.subr.mxu0 0.0
        %891 = vmatpush1.msra.mxu0 0.0
        %892 = vmatprep.subr.mxu0 0.0
        %893 = vmatpush1.msra.mxu0 0.0
        %894 = vmatprep.subr.mxu0 0.0
        %895 = vmatpush1.msra.mxu0 0.0
        %896 = vmatprep.subr.mxu0 0.0
        %897 = vmatpush1.msra.mxu0 0.0
        %898 = vmatprep.subr.mxu0 0.0
        %899 = vmatpush1.msra.mxu0 0.0
        %900 = vmatprep.subr.mxu0 0.0
        %901 = vmatpush1.msra.mxu0 0.0
        %902 = vmatprep.subr.mxu0 0.0
        %903 = vmatpush1.msra.mxu0 0.0
        %904 = vmatprep.subr.mxu0 0.0
        %905 = vmatpush1.msra.mxu0 0.0
        %906 = vmatprep.subr.mxu0 0.0
        %907 = vmatpush1.msra.mxu0 0.0
        %908 = vmatprep.subr.mxu0 0.0
        %909 = vmatpush1.msra.mxu0 0.0
        %910 = vmatprep.subr.mxu0 0.0
        %911 = vmatpush1.msra.mxu0 0.0
        %912 = vmatprep.subr.mxu0 0.0
        %913 = vmatpush1.msra.mxu0 0.0
        %914 = vmatprep.subr.mxu0 0.0
        %915 = vmatpush1.msra.mxu0 0.0
        %916 = vmatprep.subr.mxu0 0.0
        %917 = vmatpush1.msra.mxu0 0.0
        %918 = vmatprep.mubr.f32.mxu0 0.0
        %919 = vmatmul.mubr.f32.gmra.mrb[0].mxu0 %v852
        %v920 = vpop.f32.mrb[0].mxu0
        %v921 = vadd.f32 0.0, %v920
        %v922 = vpop.f32.mrb[0].mxu0
        %923 = vdwg.mxu0
        %925 = vrot.lane.b32.xlu0 %v591, 8
        %v926 = vpop.permute.xlu0 %925
        %929 = vrot.lane.b32.xlu0 %v756, 16
        %v930 = vpop.permute.xlu0 %929
        %933 = vrot.lane.b32.xlu0 %v921, 24
        %v934 = vpop.permute.xlu0 %933
        %v936 = vsel %vm267, %v426, %v926
        %vm937 = vcmask 130048
        %v938 = vsel %vm937, %v936, %v930
        %vm939 = vcmask 195584
        %v940 = vsel %vm939, %v938, %v934
        %v942 = vsel %vm184, %v940, 0
        %944 = vmatprep.subr.mxu0 0.0
        %945 = vmatpush1.msra.mxu0 %v175
        %946 = vmatprep.subr.mxu0 0.0
        %947 = vmatpush1.msra.mxu0 %v176
        %948 = vmatprep.subr.mxu0 0.0
        %949 = vmatpush1.msra.mxu0 %v177
        %950 = vmatprep.subr.mxu0 0.0
        %951 = vmatpush1.msra.mxu0 %v178
        %952 = vmatprep.subr.mxu0 0.0
        %953 = vmatpush1.msra.mxu0 0.0
        %954 = vmatprep.subr.mxu0 0.0
        %955 = vmatpush1.msra.mxu0 0.0
        %956 = vmatprep.subr.mxu0 0.0
        %957 = vmatpush1.msra.mxu0 0.0
        %958 = vmatprep.subr.mxu0 0.0
        %959 = vmatpush1.msra.mxu0 0.0
        %960 = vmatprep.subr.mxu0 0.0
        %961 = vmatpush1.msra.mxu0 0.0
        %962 = vmatprep.subr.mxu0 0.0
        %963 = vmatpush1.msra.mxu0 0.0
        %964 = vmatprep.subr.mxu0 0.0
        %965 = vmatpush1.msra.mxu0 0.0
        %966 = vmatprep.subr.mxu0 0.0
        %967 = vmatpush1.msra.mxu0 0.0
        %968 = vmatprep.subr.mxu0 0.0
        %969 = vmatpush1.msra.mxu0 0.0
        %970 = vmatprep.subr.mxu0 0.0
        %971 = vmatpush1.msra.mxu0 0.0
        %972 = vmatprep.subr.mxu0 0.0
        %973 = vmatpush1.msra.mxu0 0.0
        %974 = vmatprep.subr.mxu0 0.0
        %975 = vmatpush1.msra.mxu0 0.0
        %976 = vmatprep.subr.mxu0 0.0
        %977 = vmatpush1.msra.mxu0 0.0
        %978 = vmatprep.subr.mxu0 0.0
        %979 = vmatpush1.msra.mxu0 0.0
        %980 = vmatprep.subr.mxu0 0.0
        %981 = vmatpush1.msra.mxu0 0.0
        %982 = vmatprep.subr.mxu0 0.0
        %983 = vmatpush1.msra.mxu0 0.0
        %984 = vmatprep.subr.mxu0 0.0
        %985 = vmatpush1.msra.mxu0 0.0
        %986 = vmatprep.subr.mxu0 0.0
        %987 = vmatpush1.msra.mxu0 0.0
        %988 = vmatprep.subr.mxu0 0.0
        %989 = vmatpush1.msra.mxu0 0.0
        %990 = vmatprep.subr.mxu0 0.0
        %991 = vmatpush1.msra.mxu0 0.0
        %992 = vmatprep.subr.mxu0 0.0
        %993 = vmatpush1.msra.mxu0 0.0
        %994 = vmatprep.subr.mxu0 0.0
        %995 = vmatpush1.msra.mxu0 0.0
        %996 = vmatprep.subr.mxu0 0.0
        %997 = vmatpush1.msra.mxu0 0.0
        %998 = vmatprep.subr.mxu0 0.0
        %999 = vmatpush1.msra.mxu0 0.0
        %1000 = vmatprep.subr.mxu0 0.0
        %1001 = vmatpush1.msra.mxu0 0.0
        %1002 = vmatprep.subr.mxu0 0.0
        %1003 = vmatpush1.msra.mxu0 0.0
        %1004 = vmatprep.subr.mxu0 0.0
        %1005 = vmatpush1.msra.mxu0 0.0
        %1006 = vmatprep.subr.mxu0 0.0
        %1007 = vmatpush1.msra.mxu0 0.0
        %1008 = vmatprep.mubr.f32.mxu0 0.0
        %1009 = vmatmul.mubr.f32.gmra.mrb[0].mxu0 %v942
        %v1010 = vpop.f32.mrb[0].mxu0
        %v1011 = vadd.f32 %v179, %v1010
        %v1012 = vpop.f32.mrb[0].mxu0
        %1013 = vdwg.mxu0
        %1014 = vst [vmem:[%s173] sm:$0xff] %v1011
        %s1015 = sand.u32 %s75, 1
        %s1016 = scalar_lea.sflag [#allocation4], %s1015
        %s1017 = sand.u32 %s75, 1
        %s1018 = smul.addr %s1017, 8
        %s1019 = scalar_lea.vmem [#allocation7], %s1018
        // Predicated region
        $region37: #{tpu_custom_call.1} parent=27 // pred_check
          %p1020 = pneg %p85
        $region38: #{tpu_custom_call.1} parent=27 // pred_check_branch
          %1022 = sbr.rel (%p1020) target = $region40
        $region39: #{tpu_custom_call.1} parent=27 // pred_region
          %s1024 = ssub.s32 128, 128
          %1025 = vsyncadd %s1016, %s1024
          %s1026 = smul.addr %s20, 128
          %s1027 = scalar_lea.hbm %s2, %s1026
          %s1029 = sshll.u32 %s1019, 4
          %s1030 = int_to_ptr.vmem [resolvable:$true] %s1029
          %1032 = dma.vmem_to_hbm [thread:$0]  %s1030, 128, %s1027, %s1016
        $region40: #{tpu_custom_call.1} parent=27 // pred_fallthru
          _
      $region28: #{tpu_custom_call.1} parent=5 // pred_fallthru
        _
      %p1033 = scmp.le.s32.totalorder 2, %s15
      // Predicated region
      $region41: #{tpu_custom_call.1} parent=5 // pred_check
        %p1034 = pneg %p1033
      $region42: #{tpu_custom_call.1} parent=5 // pred_check_branch
        %1036 = sbr.rel (%p1034) target = $region44
      $region43: #{tpu_custom_call.1} parent=5 // pred_region
        %s1037 = ssub.s32 %s15, 2
        // Predicated region
        $region45: #{tpu_custom_call.1} parent=43 // pred_check
          %p1038 = pneg %p91
        $region46: #{tpu_custom_call.1} parent=43 // pred_check_branch
          %1040 = sbr.rel (%p1038) target = $region48
        $region47: #{tpu_custom_call.1} parent=43 // pred_region
          %s1041 = sand.u32 %s76, 1
          %s1042 = scalar_lea.sflag [#allocation4], %s1041
          %s1043 = sand.u32 %s76, 1
          %s1044 = smul.addr %s1043, 8
          %s1045 = scalar_lea.vmem [#allocation7], %s1044
          %1046 = dma.done %s1042, 128
        $region48: #{tpu_custom_call.1} parent=43 // pred_fallthru
          _
      $region44: #{tpu_custom_call.1} parent=5 // pred_fallthru
        _
    $region6: #{tpu_custom_call.1} parent=1 // loop_footer
      %s19 = sadd.s32 1, %s15
    $region7: #{tpu_custom_call.1} parent=1 // loop_footer_branch
      %14 = sbr.rel target = $region3
    $region8: #{tpu_custom_call.1} parent=1 // loop_exit
      _
    %1047 = vsyncpa [#allocation3], 1
    %s1048 = scalar_lea.sflag [#allocation3], 1
    %1049 = vsyncpa %s1048, 1
    %1050 = vsyncpa [#allocation6], 1
    %1051 = vsyncpa [#allocation4], 1
    %s1052 = scalar_lea.sflag [#allocation4], 1
    %1053 = vsyncpa %s1052, 1

</llo_original>
